<compile_context>
chip_gen: v5e
topology: v5e:2x2
jax: 0.10.0
libtpu: 0.0.40
codegen_flags: <defaults>
</compile_context>

<pallas_src>
import functools

import numpy as np
import jax
import jax.numpy as jnp
from jax import lax
from jax.experimental import pallas as pl
from jax.experimental.pallas import tpu as pltpu


def _spatial_softmax_kernel(inv_temp, feat_ref, pos_ref, out_ref):
    # feat_ref: (TILE_NC, HW)   input dtype (f32 / bf16), one tile of rows
    # pos_ref : (3, HW) f32     rows = [pos_x, pos_y, ones]
    # out_ref : (2, TILE_NC) f32  lane-dense [expected_x; expected_y]
    f = feat_ref[...].astype(jnp.float32) * inv_temp
    # Numerically stable softmax numerator; normalization is deferred past the
    # matmul (softmax is linear in the numerator).
    m = jnp.max(f, axis=-1, keepdims=True)
    e = jnp.exp(f - m)                                        # (TILE_NC, HW)
    # One MXU call: contract HW of (3, HW) with HW of (TILE_NC, HW)
    # -> (3, TILE_NC) = [sum(pos_x*e); sum(pos_y*e); sum(e)] per row.
    res = lax.dot_general(
        pos_ref[...], e,
        dimension_numbers=(((1,), (1,)), ((), ())),
        preferred_element_type=jnp.float32,
    )
    inv_denom = pl.reciprocal(res[2:3, :], approx=False)      # (1, TILE_NC)
    out_ref[...] = res[0:2, :] * inv_denom


def make_pos_grid(height, width):
    # Reproduce the PyTorch buffer construction exactly (np.meshgrid default
    # 'xy' indexing yields (width, height)-shaped grids, then a flat reshape).
    pos_x, pos_y = np.meshgrid(
        np.linspace(-1.0, 1.0, height), np.linspace(-1.0, 1.0, width)
    )
    pos_x = pos_x.reshape(height * width).astype(np.float32)
    pos_y = pos_y.reshape(height * width).astype(np.float32)
    return jnp.asarray(pos_x), jnp.asarray(pos_y)


def _round_up(x, m):
    return -(-x // m) * m


def spatial_softmax(feature, height, width, channel, temperature=None,
                    tile_nc=None):
    """feature: (N, C, H, W), NCHW layout (f32 or bf16). Returns (N, 2*C) f32."""
    n, c, h, w = feature.shape
    assert (c, h, w) == (channel, height, width)
    # Matches the PyTorch module: `if temperature:` -> falsy (None / 0.0)
    # means a fixed temperature of 1.0.
    temp = float(temperature) if temperature else 1.0
    inv_temp = 1.0 / temp

    pos_x, pos_y = make_pos_grid(height, width)
    # Third row of ones lets the MXU also produce the softmax denominator.
    pos = jnp.stack([pos_x, pos_y, jnp.ones_like(pos_x)], axis=0)  # (3, HW)

    nc = n * c
    hw = h * w
    feat2d = feature.reshape(nc, hw)  # keep native dtype; kernel upcasts to f32
    itemsize = jnp.dtype(feat2d.dtype).itemsize

    # --- choose the NC tile -------------------------------------------------
    if tile_nc is None:
        # ~2 MiB per feature buffer so the double-buffered pipeline stays well
        # inside scoped VMEM on every generation (v5e 16 MiB ... v7x 32 MiB).
        tile_nc = max(
            128, ((2 * 1024 * 1024) // max(hw * itemsize, 1)) // 128 * 128
        )
    if nc <= tile_nc:
        tile_nc = _round_up(nc, 8)            # single block, sublane-aligned
    nc_padded = _round_up(nc, tile_nc)
    if nc_padded != nc:
        # Padded rows are independent (zeros -> benign softmax, no NaNs) and
        # are sliced off below; there is no cross-row coupling.
        feat2d = jnp.pad(feat2d, ((0, nc_padded - nc), (0, 0)))
    grid = (nc_padded // tile_nc,)

    # Explicit VMEM budget: 2x buffered input tile + f32 temporaries + pos/out.
    vmem_bytes = int(
        2 * tile_nc * hw * itemsize          # double-buffered feature tile
        + 3 * tile_nc * hw * 4               # in-kernel f32 temporaries (f, e)
        + 2 * 3 * hw * 4                     # pos block
        + 2 * 2 * tile_nc * 4                # double-buffered output tile
        + (2 << 20)                          # headroom
    )
    vmem_bytes = min(max(vmem_bytes, 8 << 20), 48 << 20)

    out = pl.pallas_call(
        functools.partial(_spatial_softmax_kernel, inv_temp),
        out_shape=jax.ShapeDtypeStruct((2, nc_padded), jnp.float32),
        grid_spec=pltpu.PrefetchScalarGridSpec(
            num_scalar_prefetch=0,
            grid=grid,
            in_specs=[
                pl.BlockSpec((tile_nc, hw), lambda i: (i, 0)),
                pl.BlockSpec((3, hw), lambda i: (0, 0)),
            ],
            out_specs=pl.BlockSpec((2, tile_nc), lambda i: (0, i)),
        ),
        compiler_params=pltpu.CompilerParams(
            dimension_semantics=("parallel",),
            vmem_limit_bytes=vmem_bytes,
        ),
    )(feat2d, pos)

    # (2, NC) lane-dense kernel output -> (NC, 2) -> (N, 2*C): interleaves x/y
    # per channel exactly like expected_xy.view(-1, channel*2).
    return out[:, :nc].T.reshape(n, 2 * c)


def spatial_softmax_ref(feature, height, width, channel, temperature=None):
    """Pure-JAX reference mirroring the PyTorch forward."""
    n, c, h, w = feature.shape
    temp = float(temperature) if temperature else 1.0
    pos_x, pos_y = make_pos_grid(height, width)
    f = feature.reshape(-1, h * w).astype(jnp.float32) / temp
    attn = jax.nn.softmax(f, axis=-1)
    ex = jnp.sum(pos_x[None, :] * attn, axis=1, keepdims=True)
    ey = jnp.sum(pos_y[None, :] * attn, axis=1, keepdims=True)
    return jnp.concatenate([ex, ey], axis=1).reshape(n, 2 * c)


if __name__ == "__main__":
    N, C, H, W = 2, 4, 16, 16
    key = jax.random.PRNGKey(0)
    x = jax.random.normal(key, (N, C, H, W), dtype=jnp.float32)

    # f32 path, default temperature (None -> 1.0, as in the PyTorch module).
    out = spatial_softmax(x, H, W, C, temperature=None)
    out = jax.block_until_ready(out)
    ref = spatial_softmax_ref(x, H, W, C, temperature=None)
    assert out.shape == (N, 2 * C)
    np.testing.assert_allclose(np.asarray(out), np.asarray(ref),
                               rtol=1e-5, atol=1e-5)

    # bf16 input path (halves HBM traffic; kernel upcasts to f32) + explicit
    # temperature, compared against the same bf16 input run through the ref.
    x_bf16 = x.astype(jnp.bfloat16)
    out_b = jax.block_until_ready(
        spatial_softmax(x_bf16, H, W, C, temperature=2.0)
    )
    ref_b = spatial_softmax_ref(x_bf16, H, W, C, temperature=2.0)
    np.testing.assert_allclose(np.asarray(out_b), np.asarray(ref_b),
                               rtol=1e-4, atol=1e-4)

    print("KERNEL_OK")
</pallas_src>

<mosaic_0001>
module attributes {stable_mosaic.version = 11 : i64} {
  func.func @_spatial_softmax_kernel(%arg0: i32, %arg1: memref<8x256xf32, #tpu.memory_space<vmem>>, %arg2: memref<3x256xf32, #tpu.memory_space<vmem>>, %arg3: memref<2x8xf32, #tpu.memory_space<vmem>>) attributes {dimension_semantics = [#tpu.dimension_semantics<parallel>], iteration_bounds = array<i64: 1>, scalar_prefetch = 0 : i64, scratch_operands = 0 : i64, tpu.core_type = #tpu.core_type<tc>, window_params = [{transform_indices = @transform_0, window_bounds = array<i64: 8, 256>}, {pipeline_mode = #tpu.pipeline_mode<synchronous>, transform_indices = @transform_1, window_bounds = array<i64: 3, 256>}, {transform_indices = @transform_2, window_bounds = array<i64: 2, 8>}]} {
    %c0 = arith.constant 0 : index
    %c0_0 = arith.constant 0 : index
    %0 = vector.load %arg1[%c0, %c0_0] : memref<8x256xf32, #tpu.memory_space<vmem>>, vector<8x256xf32>
    %cst = arith.constant 1.000000e+00 : f32
    %1 = vector.broadcast %cst : f32 to vector<8x256xf32>
    %2 = arith.mulf %0, %1 : vector<8x256xf32>
    %cst_1 = arith.constant dense<0xFF800000> : vector<8xf32>
    %3 = vector.multi_reduction <maximumf>, %2, %cst_1 [1] : vector<8x256xf32> to vector<8xf32>
    %4 = vector.shape_cast %3 : vector<8xf32> to vector<8x1xf32>
    %5 = vector.broadcast %4 : vector<8x1xf32> to vector<8x256xf32>
    %6 = arith.subf %2, %5 : vector<8x256xf32>
    %7 = math.exp %6 : vector<8x256xf32>
    %c0_2 = arith.constant 0 : index
    %c0_3 = arith.constant 0 : index
    %8 = vector.load %arg2[%c0_2, %c0_3] : memref<3x256xf32, #tpu.memory_space<vmem>>, vector<3x256xf32>
    %cst_4 = arith.constant dense<0.000000e+00> : vector<3x8xf32>
    %9 = tpu.matmul %8, %7, %cst_4 {dimension_numbers = #tpu.dot_dimension_numbers<[1], [1], [0], [0], [0, 0, 1, 0], [], []>} : vector<3x256xf32>, vector<8x256xf32>, vector<3x8xf32> -> vector<3x8xf32>
    %10 = vector.extract_strided_slice %9 {offsets = [2, 0], sizes = [1, 8], strides = [1, 1]} : vector<3x8xf32> to vector<1x8xf32>
    %11 = tpu.reciprocal %10 : vector<1x8xf32> -> vector<1x8xf32>
    %12 = vector.extract_strided_slice %9 {offsets = [0, 0], sizes = [2, 8], strides = [1, 1]} : vector<3x8xf32> to vector<2x8xf32>
    %13 = vector.broadcast %11 : vector<1x8xf32> to vector<2x8xf32>
    %14 = arith.mulf %12, %13 : vector<2x8xf32>
    %c0_5 = arith.constant 0 : index
    %c0_6 = arith.constant 0 : index
    %15 = vector.load %arg3[%c0_5, %c0_6] : memref<2x8xf32, #tpu.memory_space<vmem>>, vector<2x8xf32>
    tpu.vector_store %arg3[%c0_5, %c0_6], %14 {strides = array<i32>} : memref<2x8xf32, #tpu.memory_space<vmem>>, vector<2x8xf32>,
    return
  }
  func.func @transform_0(%arg0: i32) -> (i32, i32) {
    %c0_i32 = arith.constant 0 : i32
    %c0_i32_0 = arith.constant 0 : i32
    return %arg0, %c0_i32 : i32, i32
  }
  func.func @transform_1(%arg0: i32) -> (i32, i32) {
    %c0_i32 = arith.constant 0 : i32
    %c0_i32_0 = arith.constant 0 : i32
    %c0_i32_1 = arith.constant 0 : i32
    return %c0_i32, %c0_i32_0 : i32, i32
  }
  func.func @transform_2(%arg0: i32) -> (i32, i32) {
    %c0_i32 = arith.constant 0 : i32
    %c0_i32_0 = arith.constant 0 : i32
    return %c0_i32, %arg0 : i32, i32
  }
}

</mosaic_0001>

<llo_original>
// kernel: tpu_custom_call.1
$region0: #{tpu_custom_call.1}
  #allocation0 [shape = 'u32[]', space=smem, size = 0x4, offset = 0x4, fixed_abs, tag = 'smem constant byte address 0x4 - core index']
  #allocation1 [shape = 'u32[72,128]{1,0:T(1,128)}', space=vmem, size = 0x9000, scoped, tag = 'internal scratch']
  %s0 = inlined_call_operand.hbm [shape: f32[8,256], index: 0, kind: input, shape index: {}]
  %s1 = inlined_call_operand.hbm [shape: f32[3,256], index: 1, kind: input, shape index: {}]
  %s2 = inlined_call_operand.hbm [shape: f32[2,8], index: 2, kind: output, shape index: {}]
  %s3 = sld [smem:[#allocation0]]
  $region26: #{tpu_custom_call.1} parent=0
    _
  %s5 = ssub.s32 1, %s3
  %s6 = scalar_select 0, %s5, %s3
  $region1: #{tpu_custom_call.1} parent=0
    #allocation2 [shape = 'u8[8192]{0}', space=vmem, size = 0x2000, scoped, tag = 'input window, operand 0, single buffered']
    #allocation3 [shape = 's32[1]{0}', space=sflag, size = 0x4, scoped, tag = 'scoped memory for tpu_custom_call.1']
    #allocation4 [shape = 's32[1]{0}', space=sflag, size = 0x4, scoped, tag = 'scoped memory for tpu_custom_call.1']
    #allocation5 [shape = 'u8[4096]{0}', space=vmem, size = 0x1000, scoped, tag = 'input window, operand 1, single buffered']
    #allocation6 [shape = 's32[1]{0}', space=sflag, size = 0x4, scoped, tag = 'scoped memory for tpu_custom_call.1']
    #allocation7 [shape = 'u8[1024]{0}', space=vmem, size = 0x400, scoped, tag = 'output window, operand 0, single buffered']
    %7 = vsyncpa [#allocation3], 0
    %8 = vsyncpa [#allocation6], 0
    %9 = vsyncpa [#allocation4], 0
    // Predicated region
    $region2: #{tpu_custom_call.1} parent=1 // pred_check
      _
    $region3: #{tpu_custom_call.1} parent=1 // pred_check_branch
      %11 = sbr.rel (0) target = $region5
    $region4: #{tpu_custom_call.1} parent=1 // pred_region
      %13 = vsyncadd [#allocation3], 0
      %s15 = sshll.u32 %s0, 4
      %s16 = int_to_ptr.hbm [resolvable:$true] %s15
      %s17 = sshll.u32 [#allocation2], 4
      %s18 = int_to_ptr.vmem [resolvable:$true] %s17
      %20 = dma.hbm_to_vmem [thread:$0]  %s16, 256, %s18, [#allocation3]
    $region5: #{tpu_custom_call.1} parent=1 // pred_fallthru
      _
    // Predicated region
    $region6: #{tpu_custom_call.1} parent=1 // pred_check
      _
    $region7: #{tpu_custom_call.1} parent=1 // pred_check_branch
      %22 = sbr.rel (0) target = $region9
    $region8: #{tpu_custom_call.1} parent=1 // pred_region
      %24 = vsyncadd [#allocation6], 0
      %s26 = sshll.u32 %s1, 4
      %s27 = int_to_ptr.hbm [resolvable:$true] %s26
      %s28 = sshll.u32 [#allocation5], 4
      %s29 = int_to_ptr.vmem [resolvable:$true] %s28
      %31 = dma.hbm_to_vmem [thread:$0]  %s27, 128, %s29, [#allocation6]
    $region9: #{tpu_custom_call.1} parent=1 // pred_fallthru
      _
    // Predicated region
    $region10: #{tpu_custom_call.1} parent=1 // pred_check
      _
    $region11: #{tpu_custom_call.1} parent=1 // pred_check_branch
      %33 = sbr.rel (0) target = $region13
    $region12: #{tpu_custom_call.1} parent=1 // pred_region
      %35 = dma.done [#allocation3], 256
    $region13: #{tpu_custom_call.1} parent=1 // pred_fallthru
      _
    // Predicated region
    $region14: #{tpu_custom_call.1} parent=1 // pred_check
      _
    $region15: #{tpu_custom_call.1} parent=1 // pred_check_branch
      %37 = sbr.rel (0) target = $region17
    $region16: #{tpu_custom_call.1} parent=1 // pred_region
      %39 = dma.done [#allocation6], 128
    $region17: #{tpu_custom_call.1} parent=1 // pred_fallthru
      _
    %v40 = vld [vmem:[#allocation2] sm:$0xff]
    %v41 = vld [vmem:[#allocation2 + $0x8] sm:$0xff]
    %v42 = vmax.f32 %v40, %v41
    %43 = vmax.xlane.f32.xlu0 %v42
    %v44 = vpop.xlane.xlu0 %43
    %v45 = vsub.f32 %v40, %v44
    %v46 = vsub.f32 %v41, %v44
    %v47 = vmul.f32 %v45, 1.442695
    %v48 = vpow.pop %v47
    %v49 = vmul.f32 %v46, 1.442695
    %v50 = vpow.pop %v49
    %v51 = vld [vmem:[#allocation5] sm:$0x77]
    %53 = vst [vmem:[#allocation1] ss:$2 sm:$0xff] %v51
    %v54 = vld.sshfl [vmem:[#allocation1] sm:$0xff pattern:$0x75316420]
    %v55 = vld.sshfl [vmem:[#allocation1 + $0x8] sm:$0xff pattern:$0x75316420]
    %58 = vmatpush.xpose.msra.mxu0 0.0
    %59 = vmatpush.xpose.msra.mxu0 0.0
    %60 = vmatpush.xpose.msra.mxu0 0.0
    %61 = vmatpush.xpose.msra.mxu0 0.0
    %62 = vmatpush.xpose.msra.mxu0 0.0
    %63 = vmatpush.xpose.msra.mxu0 0.0
    %64 = vmatpush.xpose.msra.mxu0 0.0
    %65 = vmatpush.xpose.msra.mxu0 0.0
    %66 = vmatpush.xpose.msra.mxu0 0.0
    %67 = vmatpush.xpose.msra.mxu0 0.0
    %68 = vmatpush.xpose.msra.mxu0 0.0
    %69 = vmatpush.xpose.msra.mxu0 0.0
    %70 = vmatpush.xpose.msra.mxu0 0.0
    %71 = vmatpush.xpose.msra.mxu0 0.0
    %72 = vmatpush.xpose.msra.mxu0 0.0
    %73 = vmatpush.xpose.msra.mxu0 %v48
    %74 = vmatmul.f32.gmra.mxu0 %v54
    %v75 = vpop.f32.mrf.mxu0
    %v76 = vadd.f32 0.0, %v75
    %77 = vdwg.mxu0
    %78 = vmatpush.xpose.msra.mxu0 0.0
    %79 = vmatpush.xpose.msra.mxu0 0.0
    %80 = vmatpush.xpose.msra.mxu0 0.0
    %81 = vmatpush.xpose.msra.mxu0 0.0
    %82 = vmatpush.xpose.msra.mxu0 0.0
    %83 = vmatpush.xpose.msra.mxu0 0.0
    %84 = vmatpush.xpose.msra.mxu0 0.0
    %85 = vmatpush.xpose.msra.mxu0 0.0
    %86 = vmatpush.xpose.msra.mxu0 0.0
    %87 = vmatpush.xpose.msra.mxu0 0.0
    %88 = vmatpush.xpose.msra.mxu0 0.0
    %89 = vmatpush.xpose.msra.mxu0 0.0
    %90 = vmatpush.xpose.msra.mxu0 0.0
    %91 = vmatpush.xpose.msra.mxu0 0.0
    %92 = vmatpush.xpose.msra.mxu0 0.0
    %93 = vmatpush.xpose.msra.mxu0 %v50
    %94 = vmatmul.f32.gmra.mxu0 %v55
    %v95 = vpop.f32.mrf.mxu0
    %v96 = vadd.f32 %v76, %v95
    %97 = vdwg.mxu0
    %v98 = vrcp.pop %v96
    %v99 = vmul.f32 %v96, %v98
    %v100 = vsub.f32 1.0, %v99
    %v101 = vmul.f32 %v98, %v100
    %v102 = vadd.f32 %v98, %v101
    %vm103 = vweird.f32 %v96
    %vm104 = vweird.f32 %v98
    %vm105 = vmor %vm103, %vm104
    %v106 = vsel %vm105, %v98, %v102
    %v107 = vand.u32 2147483647, %v96
    %vm108 = vcmp.eq.f32.partialorder %v107, 8.507059e+37
    %v109 = vand.u32 %v96, 2147483648
    %v110 = vor.u32 1.1754944e-38, %v109
    %v111 = vsel %vm108, %v110, %v106
    %v112 = vperm.slane %v111, 2
    %v113 = vmul.f32 %v96, %v112
    %vm114 = vcmask 58368
    %115 = vst.msk [vmem:[#allocation7] sm:$0x3] %vm114, %v113
    // Predicated region
    $region18: #{tpu_custom_call.1} parent=1 // pred_check
      _
    $region19: #{tpu_custom_call.1} parent=1 // pred_check_branch
      %117 = sbr.rel (0) target = $region21
    $region20: #{tpu_custom_call.1} parent=1 // pred_region
      %119 = vsyncadd [#allocation4], 0
      %s121 = sshll.u32 [#allocation7], 4
      %s122 = int_to_ptr.vmem [resolvable:$true] %s121
      %s123 = sshll.u32 %s2, 4
      %s124 = int_to_ptr.hbm [resolvable:$true] %s123
      %126 = dma.vmem_to_hbm [thread:$0]  %s122, 32, %s124, [#allocation4]
    $region21: #{tpu_custom_call.1} parent=1 // pred_fallthru
      _
    // Predicated region
    $region22: #{tpu_custom_call.1} parent=1 // pred_check
      _
    $region23: #{tpu_custom_call.1} parent=1 // pred_check_branch
      %128 = sbr.rel (0) target = $region25
    $region24: #{tpu_custom_call.1} parent=1 // pred_region
      %130 = dma.done [#allocation4], 32
    $region25: #{tpu_custom_call.1} parent=1 // pred_fallthru
      _
    %131 = vsyncpa [#allocation3], 1
    %132 = vsyncpa [#allocation6], 1
    %133 = vsyncpa [#allocation4], 1

</llo_original>
